<compile_context>
chip_gen: v7x
topology: tpu7x:2x2x1
jax: 0.10.0
libtpu: 0.0.40
codegen_flags: <defaults>
</compile_context>

<pallas_src>
import functools

import jax
import jax.numpy as jnp
import numpy as np
from jax.experimental import pallas as pl
from jax.experimental.pallas import tpu as pltpu

KH = KW = 3
PAD = 1
KK = KH * KW


@functools.lru_cache(maxsize=None)
def _roll_is_forward():
    """pltpu.roll is expected to match jnp.roll (element i -> i + shift).

    Verify the lane-rotation direction once on the real backend so the roll-derived
    bilinear corners below are convention-proof (if the convention were reversed we
    simply use the complementary non-negative shift).
    """
    def probe(x_ref, o_ref):
        o_ref[...] = pltpu.roll(x_ref[...], 1, axis=1)

    x = jnp.zeros((8, 128), jnp.float32).at[0, 0].set(1.0)
    y = pl.pallas_call(
        probe, out_shape=jax.ShapeDtypeStruct((8, 128), jnp.float32))(x)
    return bool(jax.block_until_ready(y)[0, 1] == 1.0)


def _deform_conv_kernel(offs_ref, x_ref, w_def_ref, out_ref, cols_ref,
                        *, H, W, TQ, s_x, s_y):
    """Grid = (batch, HW // TQ).

    offs_ref : (1, TQ, 2*KK) f32   offsets for this row tile (dy, dx per tap)
    x_ref    : (1, HW, Cin)  bf16  full flattened input image (gather source)
    w_def_ref: (KK*Cin, Cpad) bf16 fused deform weight (block-diag over groups)
    out_ref  : (1, TQ, Cpad) f32   lane-dense (padded) output tile
    cols_ref : (TQ, KK*Cin)  f32   VMEM scratch: deformable im2col block
    """
    HW = H * W
    C = x_ref.shape[2]
    offs = offs_ref[0]                                    # (TQ, 2*KK)
    x_bf = x_ref[0]                                       # (HW, C) bf16

    row0 = pl.program_id(1) * TQ
    n = row0 + jax.lax.broadcasted_iota(jnp.int32, (TQ, 1), 0)   # output pixel id
    h_out = (n // W).astype(jnp.float32)                  # (TQ, 1)
    w_out = (n % W).astype(jnp.float32)                   # (TQ, 1)
    # hoisted out of the tap loop (built once per tile)
    col_ids = jax.lax.broadcasted_iota(jnp.int32, (TQ, HW), 1)

    for k in range(KK):                                   # 9 taps, static
        i, j = k // KW, k % KW
        dy = offs[:, 2 * k:2 * k + 1]                     # (TQ, 1)
        dx = offs[:, 2 * k + 1:2 * k + 2]                 # (TQ, 1)
        py = h_out + (float(i - PAD) + dy)                # sampling rows
        px = w_out + (float(j - PAD) + dx)                # sampling cols

        y0f = jnp.floor(py)
        x0f = jnp.floor(px)
        fy = py - y0f
        fx = px - x0f
        y0 = y0f.astype(jnp.int32)
        x0 = x0f.astype(jnp.int32)
        y1 = y0 + 1
        x1 = x0 + 1

        # zero-padding outside the image: fold validity into (TQ,1) column weights
        cy0 = jnp.where((y0 >= 0) & (y0 < H), 1.0 - fy, 0.0)
        cy1 = jnp.where((y1 >= 0) & (y1 < H), fy, 0.0)
        cx0 = jnp.where((x0 >= 0) & (x0 < W), 1.0 - fx, 0.0)
        cx1 = jnp.where((x1 >= 0) & (x1 < W), fx, 0.0)

        # ONE compare builds the (y0, x0) one-hot; the other corners come from XLU
        # rolls of it.  Wrap the flat index into [0, HW) so the cyclic rolls land on
        # the true corner whenever that corner is valid; invalid corners are already
        # killed by the masked weights above.
        y0c = jnp.clip(y0, -1, H)
        x0c = jnp.clip(x0, -1, W)
        idx = y0c * W + x0c                                # in [-W-1, HW+W]
        idx = jnp.where(idx < 0, idx + HW, idx)
        idx = jnp.where(idx >= HW, idx - HW, idx)
        base = (col_ids == idx).astype(jnp.float32)        # (TQ, HW) one-hot

        # bilinear factorization: x-direction combine, then y-direction combine
        row_y0 = base * cx0 + pltpu.roll(base, s_x, axis=1) * cx1
        s_mat = row_y0 * cy0 + pltpu.roll(row_y0, s_y, axis=1) * cy1

        # bilinear gather as an MXU matmul (bf16 operands, f32 accumulation)
        sampled = jnp.dot(s_mat.astype(jnp.bfloat16), x_bf,
                          preferred_element_type=jnp.float32)       # (TQ, C)
        cols_ref[:, k * C:(k + 1) * C] = sampled

    # single fused deform-conv matmul: (TQ, KK*C) @ (KK*C, Cpad)
    out_ref[0] = jnp.dot(cols_ref[...].astype(jnp.bfloat16), w_def_ref[...],
                         preferred_element_type=jnp.float32)


def _pick_row_tile(HW):
    """Largest row tile <= 512 that divides HW, gives >= 2 tiles per image, and keeps
    the in-kernel (TQ, HW) gather planes comfortably inside scoped VMEM."""
    plane_budget = 24 * 1024 * 1024
    for tq in (512, 256, 128, 64, 32, 16, 8):
        if HW % tq == 0 and HW // tq >= 2 and 6 * tq * HW * 4 <= plane_budget:
            return tq
    return HW


def deform_conv_pallas(x, w_off, b_off, w_def, groups):
    """x: (B, C, H, W) NCHW; returns (B, C, H, W) NCHW (out_channels == in_channels)."""
    B, C, H, W = x.shape
    HW = H * W
    x = x.astype(jnp.float32)

    # ---- offset network: plain 3x3 conv, tiny -> leave to XLA (drops cols0 entirely)
    offsets = jax.lax.conv_general_dilated(
        x, w_off.astype(jnp.float32), window_strides=(1, 1),
        padding=((PAD, PAD), (PAD, PAD)),
        dimension_numbers=("NCHW", "OIHW", "NCHW"))
    offsets = offsets + b_off.astype(jnp.float32)[None, :, None, None]
    offs_flat = offsets.transpose(0, 2, 3, 1).reshape(B, HW, 2 * KK)

    # gather source: channels-last, bf16 (halves HBM->VMEM traffic; MXU operand)
    x_flat = x.transpose(0, 2, 3, 1).reshape(B, HW, C).astype(jnp.bfloat16)

    # ---- deform weight (C, C//groups, 3, 3) -> fused (KK*C, Cpad) matmul matrix,
    # block-diagonal over groups, zero-padded to a lane-dense multiple of 128.
    # TODO(synk): for C > 128 with groups > 1 switch to per-group matmuls instead of
    # the zero-padded block-diagonal weight (it wastes MXU work by a factor of groups).
    cg = C // groups
    c_pad = max(128, ((C + 127) // 128) * 128)
    w_full = jnp.zeros((KK, C, C), jnp.float32)
    for g in range(groups):
        blk = w_def[g * cg:(g + 1) * cg].astype(jnp.float32)        # (cg, cg, 3, 3)
        blk = jnp.transpose(blk, (2, 3, 1, 0)).reshape(KK, cg, cg)  # (KK, in, out)
        w_full = w_full.at[:, g * cg:(g + 1) * cg, g * cg:(g + 1) * cg].set(blk)
    w_mat = jnp.pad(w_full.reshape(KK * C, C),
                    ((0, 0), (0, c_pad - C))).astype(jnp.bfloat16)

    TQ = _pick_row_tile(HW)
    n_tiles = HW // TQ

    fwd = _roll_is_forward()
    s_x = 1 if fwd else HW - 1            # roll that moves a one-hot from p to p+1
    s_y = W if fwd else HW - W            # p -> p+W

    kernel = functools.partial(_deform_conv_kernel, H=H, W=W, TQ=TQ,
                               s_x=s_x, s_y=s_y)

    # generous, explicit VMEM budget (double-buffered blocks + in-kernel planes)
    vmem_bytes = (2 * HW * C * 2 + 2 * TQ * 2 * KK * 4 + 2 * KK * C * c_pad * 2
                  + 2 * TQ * c_pad * 4 + TQ * KK * C * 4 + 8 * TQ * HW * 4)
    vmem_limit = int(min(max(2 * vmem_bytes, 16 * 1024 * 1024), 40 * 1024 * 1024))

    cost = pl.CostEstimate(
        flops=int(B * (2 * KK * HW * HW * C + 2 * HW * KK * C * c_pad)),
        transcendentals=0,
        bytes_accessed=int(B * HW * 2 * KK * 4 + B * HW * C * 2
                           + KK * C * c_pad * 2 + B * HW * c_pad * 4))

    out_flat = pl.pallas_call(
        kernel,
        out_shape=jax.ShapeDtypeStruct((B, HW, c_pad), jnp.float32),
        grid=(B, n_tiles),
        in_specs=[
            pl.BlockSpec((1, TQ, 2 * KK), lambda b, t: (b, t, 0)),
            pl.BlockSpec((1, HW, C), lambda b, t: (b, 0, 0)),
            pl.BlockSpec((KK * C, c_pad), lambda b, t: (0, 0)),
        ],
        out_specs=pl.BlockSpec((1, TQ, c_pad), lambda b, t: (b, t, 0)),
        scratch_shapes=[pltpu.VMEM((TQ, KK * C), jnp.float32)],
        compiler_params=pltpu.CompilerParams(
            dimension_semantics=("parallel", "parallel"),
            vmem_limit_bytes=vmem_limit),
        cost_estimate=cost,
    )(offs_flat, x_flat, w_mat)

    return out_flat[:, :, :C].reshape(B, H, W, C).transpose(0, 3, 1, 2)


def deform_conv_reference(x, w_off, b_off, w_def, groups):
    """Pure-JAX reference (gather-based) of the same semantics, for validation."""
    B, C, H, W = x.shape
    offsets = jax.lax.conv_general_dilated(
        x, w_off, window_strides=(1, 1), padding=((PAD, PAD), (PAD, PAD)),
        dimension_numbers=('NCHW', 'OIHW', 'NCHW')) + b_off[None, :, None, None]
    hh = jnp.arange(H, dtype=jnp.float32)[None, :, None]
    ww = jnp.arange(W, dtype=jnp.float32)[None, None, :]
    cg = C // groups
    x_flat = x.reshape(B, C, H * W)
    out = jnp.zeros((B, C, H, W), jnp.float32)
    for k in range(KK):
        i, j = k // KW, k % KW
        dy = offsets[:, 2 * k]
        dx = offsets[:, 2 * k + 1]
        py = hh + float(i - PAD) + dy
        px = ww + float(j - PAD) + dx
        y0 = jnp.floor(py)
        x0 = jnp.floor(px)
        fy = py - y0
        fx = px - x0

        def samp(yi, xi, wgt):
            valid = (yi >= 0) & (yi < H) & (xi >= 0) & (xi < W)
            yc = jnp.clip(yi, 0, H - 1).astype(jnp.int32)
            xc = jnp.clip(xi, 0, W - 1).astype(jnp.int32)
            idx = (yc * W + xc).reshape(B, 1, H * W)
            g = jnp.take_along_axis(
                x_flat, jnp.broadcast_to(idx, (B, C, H * W)), axis=2)
            g = g.reshape(B, C, H, W)
            return g * (wgt * valid.astype(jnp.float32))[:, None, :, :]

        sampled = (samp(y0, x0, (1 - fy) * (1 - fx))
                   + samp(y0, x0 + 1, (1 - fy) * fx)
                   + samp(y0 + 1, x0, fy * (1 - fx))
                   + samp(y0 + 1, x0 + 1, fy * fx))
        wk = w_def[:, :, i, j]                                   # (C_out, cg)
        for g in range(groups):
            s_g = sampled[:, g * cg:(g + 1) * cg]
            w_g = wk[g * cg:(g + 1) * cg]
            out = out.at[:, g * cg:(g + 1) * cg].add(
                jnp.einsum('bchw,oc->bohw', s_g, w_g))
    return out


if __name__ == "__main__":
    B, C, H, W = 2, 4, 16, 16
    groups = 2

    key = jax.random.PRNGKey(0)
    k1, k2, k3, k4 = jax.random.split(key, 4)
    x = jax.random.normal(k1, (B, C, H, W), jnp.float32)
    # deterministic synthetic parameters (shapes from the module's __init__)
    w_off = jax.random.normal(k2, (2 * KK, C, KH, KW), jnp.float32) * 0.1
    b_off = jax.random.normal(k3, (2 * KK,), jnp.float32) * 0.1
    w_def = jax.random.normal(k4, (C, C // groups, KH, KW), jnp.float32) * 0.1

    out = deform_conv_pallas(x, w_off, b_off, w_def, groups)
    out = jax.block_until_ready(out)

    ref = deform_conv_reference(x, w_off, b_off, w_def, groups)
    np.testing.assert_allclose(np.asarray(out), np.asarray(ref),
                               atol=3e-2, rtol=3e-2)
    print("KERNEL_OK")
</pallas_src>

<mosaic_0001>
module attributes {stable_mosaic.version = 11 : i64} {
  func.func @probe(%arg0: memref<8x128xf32, #tpu.memory_space<vmem>>, %arg1: memref<8x128xf32, #tpu.memory_space<vmem>>) attributes {dimension_semantics = [], scalar_prefetch = 0 : i64, scratch_operands = 0 : i64, tpu.core_type = #tpu.core_type<tc>} {
    %c0 = arith.constant 0 : index
    %c0_0 = arith.constant 0 : index
    %0 = vector.load %arg0[%c0, %c0_0] : memref<8x128xf32, #tpu.memory_space<vmem>>, vector<8x128xf32>
    %c1_i32 = arith.constant 1 : i32
    %1 = tpu.dynamic_rotate %0 by %c1_i32 dim 1 : vector<8x128xf32>, i32 -> vector<8x128xf32>
    %c0_1 = arith.constant 0 : index
    %c0_2 = arith.constant 0 : index
    %2 = vector.load %arg1[%c0_1, %c0_2] : memref<8x128xf32, #tpu.memory_space<vmem>>, vector<8x128xf32>
    tpu.vector_store %arg1[%c0_1, %c0_2], %1 {strides = array<i32>} : memref<8x128xf32, #tpu.memory_space<vmem>>, vector<8x128xf32>,
    return
  }
}

</mosaic_0001>

<llo_original>
// kernel: tpu_custom_call.1
$region0: #{tpu_custom_call.1}
  #allocation0 [shape = 'u32[]', space=smem, size = 0x4, offset = 0x4, fixed_abs, tag = 'smem constant byte address 0x4 - core index']
  #allocation1 [shape = 'u32[144,128]{1,0:T(1,128)}', space=vmem, size = 0x12000, scoped, tag = 'internal scratch']
  %s0 = inlined_call_operand.hbm [shape: f32[8,128], index: 0, kind: input, shape index: {}]
  %s1 = inlined_call_operand.hbm [shape: f32[8,128], index: 1, kind: output, shape index: {}]
  %s2 = sld [smem:[#allocation0]]
  $region18: #{tpu_custom_call.1} parent=0
    _
  %s4 = ssub.s32 1, %s2
  %s5 = scalar_select 0, %s4, %s2
  $region1: #{tpu_custom_call.1} parent=0
    #allocation2 [shape = 'u8[4096]{0}', space=vmem, size = 0x1000, scoped, tag = 'input window, operand 0, single buffered']
    #allocation3 [shape = 's32[1]{0}', space=sflag, size = 0x4, scoped, tag = 'scoped memory for tpu_custom_call.1']
    #allocation4 [shape = 's32[1]{0}', space=sflag, size = 0x4, scoped, tag = 'scoped memory for tpu_custom_call.1']
    #allocation5 [shape = 'u8[4096]{0}', space=vmem, size = 0x1000, scoped, tag = 'output window, operand 0, single buffered']
    %6 = vsyncpa [#allocation3], 0
    %7 = vsyncpa [#allocation4], 0
    // Predicated region
    $region2: #{tpu_custom_call.1} parent=1 // pred_check
      _
    $region3: #{tpu_custom_call.1} parent=1 // pred_check_branch
      %9 = sbr.rel (0) target = $region5
    $region4: #{tpu_custom_call.1} parent=1 // pred_region
      %s11 = ssub.s32 128, 128
      %12 = vsyncadd [#allocation3], %s11
      %s14 = sshll.u32 [#allocation2], 4
      %s15 = int_to_ptr.vmem [resolvable:$true] %s14
      %17 = dma.hbm_to_vmem [thread:$0]  %s0, 128, %s15, [#allocation3]
    $region5: #{tpu_custom_call.1} parent=1 // pred_fallthru
      _
    // Predicated region
    $region6: #{tpu_custom_call.1} parent=1 // pred_check
      _
    $region7: #{tpu_custom_call.1} parent=1 // pred_check_branch
      %19 = sbr.rel (0) target = $region9
    $region8: #{tpu_custom_call.1} parent=1 // pred_region
      %20 = dma.done [#allocation3], 128
    $region9: #{tpu_custom_call.1} parent=1 // pred_fallthru
      _
    %v21 = vld [vmem:[#allocation2] sm:$0xff]
    %22 = vrot.lane.b32.xlu0 %v21, 1
    %v23 = vpop.permute.xlu0 %22
    %24 = vst [vmem:[#allocation5] sm:$0xff] %v23
    // Predicated region
    $region10: #{tpu_custom_call.1} parent=1 // pred_check
      _
    $region11: #{tpu_custom_call.1} parent=1 // pred_check_branch
      %26 = sbr.rel (0) target = $region13
    $region12: #{tpu_custom_call.1} parent=1 // pred_region
      %s28 = ssub.s32 128, 128
      %29 = vsyncadd [#allocation4], %s28
      %s31 = sshll.u32 [#allocation5], 4
      %s32 = int_to_ptr.vmem [resolvable:$true] %s31
      %34 = dma.vmem_to_hbm [thread:$0]  %s32, 128, %s1, [#allocation4]
    $region13: #{tpu_custom_call.1} parent=1 // pred_fallthru
      _
    // Predicated region
    $region14: #{tpu_custom_call.1} parent=1 // pred_check
      _
    $region15: #{tpu_custom_call.1} parent=1 // pred_check_branch
      %36 = sbr.rel (0) target = $region17
    $region16: #{tpu_custom_call.1} parent=1 // pred_region
      %37 = dma.done [#allocation4], 128
    $region17: #{tpu_custom_call.1} parent=1 // pred_fallthru
      _
    %38 = vsyncpa [#allocation3], 1
    %39 = vsyncpa [#allocation4], 1

</llo_original>
